<compile_context>
chip_gen: v5e
topology: v5e:2x2
jax: 0.10.0
libtpu: 0.0.40
codegen_flags: <defaults>
</compile_context>

<pallas_src>
import jax
import jax.numpy as jnp
from jax.experimental import pallas as pl
from jax.experimental.pallas import tpu as pltpu


# ----------------------------- kernels ------------------------------------ #

def _stats_kernel(x_ref, sum_ref, sumsq_ref, acc_ref, accsq_ref):
    """Pass 1: per-channel sum and sum-of-squares.

    x_ref:   (C, T) tile (N axis squeezed), activation dtype.
    outputs: (C, 1) fp32 sum / sum-of-squares (written once, at the end).
    scratch: (C, T) fp32 elementwise accumulators (VPU adds in the hot path;
             the cross-lane reduce happens only once at the final step).
    """
    n = pl.program_id(0)
    k = pl.program_id(1)

    @pl.when(jnp.logical_and(n == 0, k == 0))
    def _init():
        acc_ref[...] = jnp.zeros_like(acc_ref)
        accsq_ref[...] = jnp.zeros_like(accsq_ref)

    x = x_ref[...].astype(jnp.float32)
    acc_ref[...] += x
    accsq_ref[...] += x * x

    @pl.when(jnp.logical_and(n == pl.num_programs(0) - 1,
                             k == pl.num_programs(1) - 1))
    def _finalize():
        sum_ref[...] = jnp.sum(acc_ref[...], axis=-1, keepdims=True)
        sumsq_ref[...] = jnp.sum(accsq_ref[...], axis=-1, keepdims=True)


def _norm_kernel(x_ref, scale_ref, shift_ref, o_ref):
    """Pass 2: y = x * scale + shift, per channel (affine folded in wrapper)."""
    x = x_ref[...].astype(jnp.float32)          # (C, T)
    y = x * scale_ref[...] + shift_ref[...]     # (C, 1) broadcast over lanes
    o_ref[...] = y.astype(o_ref.dtype)


# ----------------------------- wrapper ------------------------------------ #

def _pick_tile(hw, c, itemsize, vmem_budget_bytes=8 * 1024 * 1024):
    """Largest lane tile that divides hw, is a multiple of 128, and keeps
    double-buffered in/out tiles + fp32 scratch under a conservative budget
    (so it fits even the 16 MiB v5e scoped-VMEM default with headroom)."""
    if hw % 128 != 0:
        return hw  # full-extent block is always legal
    # per-lane-element bytes: 2x in + 2x out pipeline buffers (activation
    # dtype) + 2 fp32 scratch accumulators, all with C sublanes.
    per_elem = c * (4 * itemsize + 2 * 4)
    max_t = max(128, (vmem_budget_bytes // per_elem) // 128 * 128)
    best, t = 128, 128
    while t <= min(hw, max_t):
        if hw % t == 0:
            best = t
        t += 128
    return best


def batchnorm2d_forward(x, weight, bias, running_mean, running_var,
                        *, eps=1e-5, momentum=0.1):
    """Training-mode BatchNorm2d with batch averages (spec's default path).

    x: (N, C, H, W).  Returns (y, new_running_mean, new_running_var).
    """
    N, C, H, W = x.shape
    HW = H * W
    x3 = x.reshape(N, C, HW)                      # free reshape, no transpose
    itemsize = jnp.dtype(x.dtype).itemsize
    T = _pick_tile(HW, C, itemsize)
    n_t = HW // T
    vmem_limit = 32 * 1024 * 1024                 # safe on v5e/v6e/v7x

    # ---- pass 1: per-channel sum / sum-of-squares -------------------------
    s, ss = pl.pallas_call(
        _stats_kernel,
        out_shape=(jax.ShapeDtypeStruct((C, 1), jnp.float32),
                   jax.ShapeDtypeStruct((C, 1), jnp.float32)),
        grid=(N, n_t),
        in_specs=[pl.BlockSpec((None, C, T), lambda n, k: (n, 0, k))],
        out_specs=(pl.BlockSpec((C, 1), lambda n, k: (0, 0)),
                   pl.BlockSpec((C, 1), lambda n, k: (0, 0))),
        scratch_shapes=[pltpu.VMEM((C, T), jnp.float32),
                        pltpu.VMEM((C, T), jnp.float32)],
        compiler_params=pltpu.CompilerParams(
            dimension_semantics=("arbitrary", "arbitrary"),
            vmem_limit_bytes=vmem_limit),
    )(x3)

    # ---- O(C) glue: fold stats + affine into per-channel scale/shift ------
    count = jnp.float32(N * HW)
    mean = s[:, 0] / count                                      # (C,) fp32
    var = jnp.maximum(ss[:, 0] / count - mean * mean, 0.0)      # biased var
    inv_std = jax.lax.rsqrt(var + eps)
    scale = weight.astype(jnp.float32) * inv_std
    shift = bias.astype(jnp.float32) - mean * scale

    # ---- pass 2: normalize tile-by-tile ------------------------------------
    y3 = pl.pallas_call(
        _norm_kernel,
        out_shape=jax.ShapeDtypeStruct((N, C, HW), x.dtype),
        grid=(N, n_t),
        in_specs=[pl.BlockSpec((None, C, T), lambda n, k: (n, 0, k)),
                  pl.BlockSpec((C, 1), lambda n, k: (0, 0)),
                  pl.BlockSpec((C, 1), lambda n, k: (0, 0))],
        out_specs=pl.BlockSpec((None, C, T), lambda n, k: (n, 0, k)),
        compiler_params=pltpu.CompilerParams(
            dimension_semantics=("parallel", "parallel"),
            vmem_limit_bytes=vmem_limit),
    )(x3, scale.reshape(C, 1), shift.reshape(C, 1))

    y = y3.reshape(N, C, H, W)

    # Running-buffer updates, matching the spec's in-place math (biased var).
    new_running_mean = running_mean + momentum * (
        mean.astype(running_mean.dtype) - running_mean)
    new_running_var = running_var + momentum * (
        var.astype(running_var.dtype) - running_var)
    return y, new_running_mean, new_running_var


# ----------------------------- demo / check -------------------------------- #

if __name__ == "__main__":
    key = jax.random.PRNGKey(0)
    kx, kw = jax.random.split(key)

    N, C, H, W = 2, 4, 16, 16
    x = jax.random.normal(kx, (N, C, H, W), dtype=jnp.float32)

    # Deterministic parameter init mirroring reset_parameters():
    #   weight ~ U[0,1), bias = 0, running_mean = 0, running_var = 1.
    weight = jax.random.uniform(kw, (C,), dtype=jnp.float32)
    bias = jnp.zeros((C,), dtype=jnp.float32)
    running_mean = jnp.zeros((C,), dtype=jnp.float32)
    running_var = jnp.ones((C,), dtype=jnp.float32)

    y, new_rm, new_rv = batchnorm2d_forward(
        x, weight, bias, running_mean, running_var, eps=1e-5, momentum=0.1)
    jax.block_until_ready((y, new_rm, new_rv))

    # Pure-JAX reference of the spec's forward semantics.
    xr = jnp.transpose(x, (1, 0, 2, 3)).reshape(C, -1)
    bm = xr.mean(axis=1)
    bv = ((xr - bm[:, None]) ** 2).mean(axis=1)       # biased, like the spec
    y_ref = (weight[None, :, None, None]
             * (x - bm[None, :, None, None])
             / jnp.sqrt(bv + 1e-5)[None, :, None, None]
             + bias[None, :, None, None])
    assert jnp.allclose(y, y_ref, atol=1e-4, rtol=1e-4)
    assert jnp.allclose(new_rm, running_mean + 0.1 * (bm - running_mean),
                        atol=1e-5)
    assert jnp.allclose(new_rv, running_var + 0.1 * (bv - running_var),
                        atol=1e-5)

    # TODO(synk): backward pass (ShiftAndScale.backward) is autograd-only and
    # not part of this forward kernel.

    print("KERNEL_OK")
</pallas_src>

<mosaic_0001>
module attributes {stable_mosaic.version = 11 : i64} {
  func.func @_stats_kernel(%arg0: i32, %arg1: i32, %arg2: memref<1x4x256xf32, #tpu.memory_space<vmem>>, %arg3: memref<4x1xf32, #tpu.memory_space<vmem>>, %arg4: memref<4x1xf32, #tpu.memory_space<vmem>>, %arg5: memref<4x256xf32, #tpu.memory_space<vmem>>, %arg6: memref<4x256xf32, #tpu.memory_space<vmem>>) attributes {dimension_semantics = [#tpu.dimension_semantics<arbitrary>, #tpu.dimension_semantics<arbitrary>], iteration_bounds = array<i64: 2, 1>, scalar_prefetch = 0 : i64, scratch_operands = 2 : i64, tpu.core_type = #tpu.core_type<tc>, window_params = [{transform_indices = @transform_0, window_bounds = array<i64: 1, 4, 256>}, {pipeline_mode = #tpu.pipeline_mode<synchronous>, transform_indices = @transform_1, window_bounds = array<i64: 4, 1>}, {pipeline_mode = #tpu.pipeline_mode<synchronous>, transform_indices = @transform_2, window_bounds = array<i64: 4, 1>}]} {
    %c0_i32 = arith.constant 0 : i32
    %0 = arith.cmpi eq, %arg0, %c0_i32 : i32
    %c0_i32_0 = arith.constant 0 : i32
    %1 = arith.cmpi eq, %arg1, %c0_i32_0 : i32
    %2 = arith.andi %0, %1 : i1
    %3 = arith.extui %2 : i1 to i32
    %c0_i32_1 = arith.constant 0 : i32
    %4 = arith.cmpi ne, %3, %c0_i32_1 : i32
    scf.if %4 {
      %cst = arith.constant 0.000000e+00 : f32
      %19 = vector.broadcast %cst : f32 to vector<4x256xf32>
      %c0_14 = arith.constant 0 : index
      %c0_15 = arith.constant 0 : index
      %20 = vector.load %arg5[%c0_14, %c0_15] : memref<4x256xf32, #tpu.memory_space<vmem>>, vector<4x256xf32>
      tpu.vector_store %arg5[%c0_14, %c0_15], %19 {strides = array<i32>} : memref<4x256xf32, #tpu.memory_space<vmem>>, vector<4x256xf32>,
      %cst_16 = arith.constant 0.000000e+00 : f32
      %21 = vector.broadcast %cst_16 : f32 to vector<4x256xf32>
      %c0_17 = arith.constant 0 : index
      %c0_18 = arith.constant 0 : index
      %22 = vector.load %arg6[%c0_17, %c0_18] : memref<4x256xf32, #tpu.memory_space<vmem>>, vector<4x256xf32>
      tpu.vector_store %arg6[%c0_17, %c0_18], %21 {strides = array<i32>} : memref<4x256xf32, #tpu.memory_space<vmem>>, vector<4x256xf32>,
    } else {
    }
    %c0 = arith.constant 0 : index
    %c0_2 = arith.constant 0 : index
    %c0_3 = arith.constant 0 : index
    %5 = vector.load %arg2[%c0, %c0_2, %c0_3] : memref<1x4x256xf32, #tpu.memory_space<vmem>>, vector<1x4x256xf32>
    %6 = vector.shape_cast %5 : vector<1x4x256xf32> to vector<4x256xf32>
    %c0_4 = arith.constant 0 : index
    %c0_5 = arith.constant 0 : index
    %7 = vector.load %arg5[%c0_4, %c0_5] : memref<4x256xf32, #tpu.memory_space<vmem>>, vector<4x256xf32>
    %8 = arith.addf %7, %6 : vector<4x256xf32>
    %c0_6 = arith.constant 0 : index
    %c0_7 = arith.constant 0 : index
    %9 = vector.load %arg5[%c0_6, %c0_7] : memref<4x256xf32, #tpu.memory_space<vmem>>, vector<4x256xf32>
    tpu.vector_store %arg5[%c0_6, %c0_7], %8 {strides = array<i32>} : memref<4x256xf32, #tpu.memory_space<vmem>>, vector<4x256xf32>,
    %c0_8 = arith.constant 0 : index
    %c0_9 = arith.constant 0 : index
    %10 = vector.load %arg6[%c0_8, %c0_9] : memref<4x256xf32, #tpu.memory_space<vmem>>, vector<4x256xf32>
    %11 = arith.mulf %6, %6 : vector<4x256xf32>
    %12 = arith.addf %10, %11 : vector<4x256xf32>
    %c0_10 = arith.constant 0 : index
    %c0_11 = arith.constant 0 : index
    %13 = vector.load %arg6[%c0_10, %c0_11] : memref<4x256xf32, #tpu.memory_space<vmem>>, vector<4x256xf32>
    tpu.vector_store %arg6[%c0_10, %c0_11], %12 {strides = array<i32>} : memref<4x256xf32, #tpu.memory_space<vmem>>, vector<4x256xf32>,
    %c1_i32 = arith.constant 1 : i32
    %14 = arith.cmpi eq, %arg0, %c1_i32 : i32
    %c0_i32_12 = arith.constant 0 : i32
    %15 = arith.cmpi eq, %arg1, %c0_i32_12 : i32
    %16 = arith.andi %14, %15 : i1
    %17 = arith.extui %16 : i1 to i32
    %c0_i32_13 = arith.constant 0 : i32
    %18 = arith.cmpi ne, %17, %c0_i32_13 : i32
    scf.if %18 {
      %c0_14 = arith.constant 0 : index
      %c0_15 = arith.constant 0 : index
      %19 = vector.load %arg5[%c0_14, %c0_15] : memref<4x256xf32, #tpu.memory_space<vmem>>, vector<4x256xf32>
      %cst = arith.constant dense<0.000000e+00> : vector<4xf32>
      %20 = vector.multi_reduction <add>, %19, %cst [1] : vector<4x256xf32> to vector<4xf32>
      %21 = vector.shape_cast %20 : vector<4xf32> to vector<4x1xf32>
      %c0_16 = arith.constant 0 : index
      %c0_17 = arith.constant 0 : index
      %22 = vector.load %arg3[%c0_16, %c0_17] : memref<4x1xf32, #tpu.memory_space<vmem>>, vector<4x1xf32>
      tpu.vector_store %arg3[%c0_16, %c0_17], %21 {strides = array<i32>} : memref<4x1xf32, #tpu.memory_space<vmem>>, vector<4x1xf32>,
      %c0_18 = arith.constant 0 : index
      %c0_19 = arith.constant 0 : index
      %23 = vector.load %arg6[%c0_18, %c0_19] : memref<4x256xf32, #tpu.memory_space<vmem>>, vector<4x256xf32>
      %cst_20 = arith.constant dense<0.000000e+00> : vector<4xf32>
      %24 = vector.multi_reduction <add>, %23, %cst_20 [1] : vector<4x256xf32> to vector<4xf32>
      %25 = vector.shape_cast %24 : vector<4xf32> to vector<4x1xf32>
      %c0_21 = arith.constant 0 : index
      %c0_22 = arith.constant 0 : index
      %26 = vector.load %arg4[%c0_21, %c0_22] : memref<4x1xf32, #tpu.memory_space<vmem>>, vector<4x1xf32>
      tpu.vector_store %arg4[%c0_21, %c0_22], %25 {strides = array<i32>} : memref<4x1xf32, #tpu.memory_space<vmem>>, vector<4x1xf32>,
    } else {
    }
    return
  }
  func.func @transform_0(%arg0: i32, %arg1: i32) -> (i32, i32, i32) {
    %c0_i32 = arith.constant 0 : i32
    %c0_i32_0 = arith.constant 0 : i32
    return %arg0, %c0_i32, %arg1 : i32, i32, i32
  }
  func.func @transform_1(%arg0: i32, %arg1: i32) -> (i32, i32) {
    %c0_i32 = arith.constant 0 : i32
    %c0_i32_0 = arith.constant 0 : i32
    %c0_i32_1 = arith.constant 0 : i32
    return %c0_i32, %c0_i32_0 : i32, i32
  }
  func.func @transform_2(%arg0: i32, %arg1: i32) -> (i32, i32) {
    %c0_i32 = arith.constant 0 : i32
    %c0_i32_0 = arith.constant 0 : i32
    %c0_i32_1 = arith.constant 0 : i32
    return %c0_i32, %c0_i32_0 : i32, i32
  }
}

</mosaic_0001>

<llo_original>
// kernel: tpu_custom_call.1
$region0: #{tpu_custom_call.1}
  #allocation0 [shape = 'u32[]', space=smem, size = 0x4, offset = 0x4, fixed_abs, tag = 'smem constant byte address 0x4 - core index']
  #allocation1 [shape = 'u32[72,128]{1,0:T(1,128)}', space=vmem, size = 0x9000, scoped, tag = 'internal scratch']
  #allocation2 [shape = 'f32[4,256]{1,0:T(4,128)}', space=vmem, size = 0x1000, scoped, tag = 'scratch operand']
  #allocation3 [shape = 'f32[4,256]{1,0:T(4,128)}', space=vmem, size = 0x1000, scoped, tag = 'scratch operand']
  %s0 = inlined_call_operand.hbm [shape: f32[2,4,256], index: 0, kind: input, shape index: {}]
  %s1 = inlined_call_operand.vmem [shape: f32[4,1], index: 1, kind: output, shape index: {0}]
  %s2 = inlined_call_operand.vmem [shape: f32[4,1], index: 2, kind: output, shape index: {1}]
  %3 = xla_tuple %s1, %s2
  %s4 = sld [smem:[#allocation0]]
  $region57: #{tpu_custom_call.1} parent=0
    _
  %s6 = ssub.s32 1, %s4
  %s7 = scalar_select 0, %s6, %s4
  $region1: #{tpu_custom_call.1} parent=0
    #allocation4 [shape = 'u8[8192]{0}', space=vmem, size = 0x2000, scoped, tag = 'input window, operand 0']
    #allocation5 [shape = 's32[2]{0}', space=sflag, size = 0x8, scoped, tag = 'scoped memory for tpu_custom_call.1']
    %8 = vsyncpa [#allocation5], 0
    %s9 = scalar_lea.sflag [#allocation5], 1
    %10 = vsyncpa %s9, 0
    loop: start=0, step=1, limit=4
    $region2: #{tpu_custom_call.1} parent=1 // loop_pre_header
      _
    $region3: #{tpu_custom_call.1} parent=1 // loop_header
      %s12 = sphi 0, %s16
      %p13 = scmp.ge.s32.totalorder %s12, 4
      %s19 = sphi 0, %s31
      %s20 = sphi 0, %s27
      %s21 = sphi 0, %s19
      %s22 = sphi 0, %s20
      %s23 = sphi 0, %s21
      %s24 = sphi 0, %s22
      %s36 = sphi 0, %s38
      %s39 = sphi 0, %s36
      %s40 = sphi 0, %s39
      %s56 = sphi 0, %s40
      %s60 = sphi 0, %s60
      %s62 = sphi 0, %s60
      %s63 = sphi 0, %s62
      %s77 = sphi 0, %s63
      %s81 = sphi 0, %s81
      %s83 = sphi 0, %s81
      %s84 = sphi 0, %s83
      %s98 = sphi 0, %s84
    $region4: #{tpu_custom_call.1} parent=1 // loop_header_branch
      %15 = sbr.rel (%p13) target = $region8
    $region5: #{tpu_custom_call.1} parent=1 // loop_body
      %s17 = ssub.s32 %s12, 1
      %s18 = ssub.s32 %s12, 2
      %s25 = sadd.s32 1, %s20
      %p26 = scmp.ge.s32.totalorder %s25, 1
      %s27 = scalar_select %p26, 0, %s25
      %s28 = sadd.s32 1, %s19
      %s29 = scalar_select %p26, %s28, %s19
      %p30 = scmp.ge.s32.totalorder %s29, 2
      %s31 = scalar_select %p30, 0, %s29
      %s32 = ssub.s32 %s19, %s31
      %s33 = ssub.s32 %s20, %s27
      %s34 = sor.u32 %s32, %s33
      %p35 = scmp.eq.s32.totalorder %s34, 0
      %s37 = sadd.s32 %s36, 1
      %s38 = scalar_select %p35, %s36, %s37
      %p41 = pneg %p35
      %p42 = scmp.eq.s32.totalorder %s12, 1
      %p43 = por %p41, %p42
      %p44 = scmp.ne.s32.totalorder %s36, %s39
      %p45 = scmp.eq.s32.totalorder %s12, 0
      %p46 = por %p44, %p45
      %p47 = scmp.ne.s32.totalorder %s36, %s39
      %p48 = scmp.eq.s32.totalorder %s17, 1
      %p49 = por %p47, %p48
      %p50 = scmp.ne.s32.totalorder %s39, %s40
      %p51 = scmp.eq.s32.totalorder %s17, 0
      %p52 = por %p50, %p51
      %p53 = scmp.ne.s32.totalorder %s39, %s40
      %p54 = scmp.eq.s32.totalorder %s18, 1
      %p55 = por %p53, %p54
      %p57 = scmp.ne.s32.totalorder %s40, %s56
      %p58 = scmp.eq.s32.totalorder %s18, 0
      %p59 = por %p57, %p58
      %s61 = sadd.s32 %s60, 1
      %p64 = scmp.eq.s32.totalorder %s12, 1
      %p65 = scmp.ne.s32.totalorder %s60, %s62
      %p66 = scmp.eq.s32.totalorder %s12, 0
      %p67 = por %p65, %p66
      %p68 = scmp.ne.s32.totalorder %s60, %s62
      %p69 = scmp.eq.s32.totalorder %s17, 1
      %p70 = por %p68, %p69
      %p71 = scmp.ne.s32.totalorder %s62, %s63
      %p72 = scmp.eq.s32.totalorder %s17, 0
      %p73 = por %p71, %p72
      %p74 = scmp.ne.s32.totalorder %s62, %s63
      %p75 = scmp.eq.s32.totalorder %s18, 1
      %p76 = por %p74, %p75
      %p78 = scmp.ne.s32.totalorder %s63, %s77
      %p79 = scmp.eq.s32.totalorder %s18, 0
      %p80 = por %p78, %p79
      %s82 = sadd.s32 %s81, 1
      %p85 = scmp.eq.s32.totalorder %s12, 1
      %p86 = scmp.ne.s32.totalorder %s81, %s83
      %p87 = scmp.eq.s32.totalorder %s12, 0
      %p88 = por %p86, %p87
      %p89 = scmp.ne.s32.totalorder %s81, %s83
      %p90 = scmp.eq.s32.totalorder %s17, 1
      %p91 = por %p89, %p90
      %p92 = scmp.ne.s32.totalorder %s83, %s84
      %p93 = scmp.eq.s32.totalorder %s17, 0
      %p94 = por %p92, %p93
      %p95 = scmp.ne.s32.totalorder %s83, %s84
      %p96 = scmp.eq.s32.totalorder %s18, 1
      %p97 = por %p95, %p96
      %p99 = scmp.ne.s32.totalorder %s84, %s98
      %p100 = scmp.eq.s32.totalorder %s18, 0
      %p101 = por %p99, %p100
      %p102 = scmp.le.s32.totalorder 1, %s12
      %p103 = scmp.lt.s32.totalorder %s12, 3
      %p104 = pnand %p102, %p103
      %p105 = pneg %p104
      // Predicated region
      $region9: #{tpu_custom_call.1} parent=5 // pred_check
        _
      $region10: #{tpu_custom_call.1} parent=5 // pred_check_branch
        %107 = sbr.rel (%p104) target = $region12
      $region11: #{tpu_custom_call.1} parent=5 // pred_region
        %s108 = ssub.s32 %s12, 1
      $region12: #{tpu_custom_call.1} parent=5 // pred_fallthru
        _
      %p109 = scmp.lt.s32.totalorder %s12, 2
      // Predicated region
      $region13: #{tpu_custom_call.1} parent=5 // pred_check
        %p110 = pneg %p109
      $region14: #{tpu_custom_call.1} parent=5 // pred_check_branch
        %112 = sbr.rel (%p110) target = $region16
      $region15: #{tpu_custom_call.1} parent=5 // pred_region
        // Predicated region
        $region17: #{tpu_custom_call.1} parent=15 // pred_check
          %p113 = pneg %p46
        $region18: #{tpu_custom_call.1} parent=15 // pred_check_branch
          %115 = sbr.rel (%p113) target = $region20
        $region19: #{tpu_custom_call.1} parent=15 // pred_region
          %s116 = sand.u32 %s36, 1
          %s117 = scalar_lea.sflag [#allocation5], %s116
          %s118 = sand.u32 %s36, 1
          %s119 = smul.addr %s118, 8
          %s120 = scalar_lea.vmem [#allocation4], %s119
          %s121 = smul.u32 2, %s20
          %123 = vsyncadd %s117, 0
          %s124 = smul.addr %s19, 2
          %s125 = sadd.s32 %s121, %s124
          %s126 = smul.addr %s125, 4
          %s127 = scalar_lea.hbm %s0, %s126
          %s129 = sshll.u32 %s127, 4
          %s130 = int_to_ptr.hbm [resolvable:$true] %s129
          %s131 = sshll.u32 %s120, 4
          %s132 = int_to_ptr.vmem [resolvable:$true] %s131
          %134 = dma.hbm_to_vmem [thread:$0]  %s130, 128, %s132, %s117
        $region20: #{tpu_custom_call.1} parent=15 // pred_fallthru
          _
      $region16: #{tpu_custom_call.1} parent=5 // pred_fallthru
        _
      %p135 = scmp.le.s32.totalorder 1, %s12
      %p136 = scmp.lt.s32.totalorder %s12, 3
      %p137 = pnand %p135, %p136
      %p138 = pneg %p137
      // Predicated region
      $region21: #{tpu_custom_call.1} parent=5 // pred_check
        _
      $region22: #{tpu_custom_call.1} parent=5 // pred_check_branch
        %140 = sbr.rel (%p137) target = $region24
      $region23: #{tpu_custom_call.1} parent=5 // pred_region
        %s141 = ssub.s32 %s12, 1
        %s142 = sand.u32 %s39, 1
        %s143 = scalar_lea.sflag [#allocation5], %s142
        %s144 = sand.u32 %s39, 1
        %s145 = smul.addr %s144, 8
        %s146 = scalar_lea.vmem [#allocation4], %s145
        // Predicated region
        $region25: #{tpu_custom_call.1} parent=23 // pred_check
          %p147 = pneg %p52
        $region26: #{tpu_custom_call.1} parent=23 // pred_check_branch
          %149 = sbr.rel (%p147) target = $region28
        $region27: #{tpu_custom_call.1} parent=23 // pred_region
          %151 = dma.done %s143, 128
        $region28: #{tpu_custom_call.1} parent=23 // pred_fallthru
          _
        %s152 = sand.u32 %s39, 1
        %s153 = scalar_lea.sflag [#allocation5], %s152
        %s154 = sand.u32 %s39, 1
        %s155 = smul.addr %s154, 8
        %s156 = scalar_lea.vmem [#allocation4], %s155
        %p157 = pneg %p52
        %p158 = pneg %p49
        %p159 = pneg %p73
        %p160 = pneg %p70
        %p161 = pneg %p94
        %p162 = pneg %p91
        %s163 = smul.u32 2, %s22
        %p164 = scmp.eq.s32.totalorder %s21, 0
        %p165 = scmp.eq.s32.totalorder %s22, 0
        %p166 = pnand %p164, %p165
        %p167 = pneg %p166
        // Predicated region
        $region29: #{tpu_custom_call.1} parent=23 // pred_check
          _
        $region30: #{tpu_custom_call.1} parent=23 // pred_check_branch
          %169 = sbr.rel (%p166) target = $region32
        $region31: #{tpu_custom_call.1} parent=23 // pred_region
          %170 = vst [vmem:[#allocation2] sm:$0xff] 0.0
          %171 = vst [vmem:[#allocation3] sm:$0xff] 0.0
        $region32: #{tpu_custom_call.1} parent=23 // pred_fallthru
          _
        %v172 = vld [vmem:[%s146] sm:$0xff]
        %v173 = vld [vmem:[#allocation2] sm:$0xff]
        %v174 = vadd.f32 %v173, %v172
        %175 = vst [vmem:[#allocation2] sm:$0xff] %v174
        %v176 = vld [vmem:[#allocation3] sm:$0xff]
        %v177 = vmul.f32 %v172, %v172
        %v178 = vadd.f32 %v176, %v177
        %179 = vst [vmem:[#allocation3] sm:$0xff] %v178
        %p180 = scmp.eq.s32.totalorder %s21, 1
        %p181 = pnand %p180, %p165
        %p182 = pneg %p181
        // Predicated region
        $region33: #{tpu_custom_call.1} parent=23 // pred_check
          _
        $region34: #{tpu_custom_call.1} parent=23 // pred_check_branch
          %184 = sbr.rel (%p181) target = $region36
        $region35: #{tpu_custom_call.1} parent=23 // pred_region
          %v185 = vld [vmem:[#allocation2] sm:$0xff]
          %187 = vst [vmem:[#allocation1] ss:$2 sm:$0xff] %v185
          %v188 = vld.sshfl [vmem:[#allocation1] sm:$0xff pattern:$0x75316420]
          %v189 = vld.sshfl [vmem:[#allocation1 + $0x8] sm:$0xff pattern:$0x75316420]
          %vm192 = vcmask 1043456
          %v193 = vsel %vm192, %v188, 0.0
          %v194 = vsel %vm192, %v189, 0.0
          %v195 = vadd.f32 %v193, %v194
          %196 = vadd.xlane.f32.xlu0 %v195
          %v197 = vpop.xlane.xlu0 %196
          %vm198 = vcmask 3072
          %199 = vst.msk [vmem:[%s1] sm:$0xf] %vm198, %v197
          %v200 = vld [vmem:[#allocation3] sm:$0xff]
          %202 = vst [vmem:[#allocation1] ss:$2 sm:$0xff] %v200
          %v203 = vld.sshfl [vmem:[#allocation1] sm:$0xff pattern:$0x75316420]
          %v204 = vld.sshfl [vmem:[#allocation1 + $0x8] sm:$0xff pattern:$0x75316420]
          %v207 = vsel %vm192, %v203, 0.0
          %v208 = vsel %vm192, %v204, 0.0
          %v209 = vadd.f32 %v207, %v208
          %210 = vadd.xlane.f32.xlu0 %v209
          %v211 = vpop.xlane.xlu0 %210
          %212 = vst.msk [vmem:[%s2] sm:$0xf] %vm198, %v211
        $region36: #{tpu_custom_call.1} parent=23 // pred_fallthru
          _
        // Predicated region
        $region37: #{tpu_custom_call.1} parent=23 // pred_check
          %p213 = pneg %p70
        $region38: #{tpu_custom_call.1} parent=23 // pred_check_branch
          %215 = sbr.rel (%p213) target = $region40
        $region39: #{tpu_custom_call.1} parent=23 // pred_region
          _
        $region40: #{tpu_custom_call.1} parent=23 // pred_fallthru
          _
        // Predicated region
        $region41: #{tpu_custom_call.1} parent=23 // pred_check
          %p216 = pneg %p91
        $region42: #{tpu_custom_call.1} parent=23 // pred_check_branch
          %218 = sbr.rel (%p216) target = $region44
        $region43: #{tpu_custom_call.1} parent=23 // pred_region
          _
        $region44: #{tpu_custom_call.1} parent=23 // pred_fallthru
          _
        // Predicated region
        $region45: #{tpu_custom_call.1} parent=23 // pred_check
          %p219 = pneg %p70
        $region46: #{tpu_custom_call.1} parent=23 // pred_check_branch
          %221 = sbr.rel (%p219) target = $region48
        $region47: #{tpu_custom_call.1} parent=23 // pred_region
          _
        $region48: #{tpu_custom_call.1} parent=23 // pred_fallthru
          _
        // Predicated region
        $region49: #{tpu_custom_call.1} parent=23 // pred_check
          %p222 = pneg %p91
        $region50: #{tpu_custom_call.1} parent=23 // pred_check_branch
          %224 = sbr.rel (%p222) target = $region52
        $region51: #{tpu_custom_call.1} parent=23 // pred_region
          _
        $region52: #{tpu_custom_call.1} parent=23 // pred_fallthru
          _
      $region24: #{tpu_custom_call.1} parent=5 // pred_fallthru
        _
      %p225 = scmp.le.s32.totalorder 2, %s12
      // Predicated region
      $region53: #{tpu_custom_call.1} parent=5 // pred_check
        %p226 = pneg %p225
      $region54: #{tpu_custom_call.1} parent=5 // pred_check_branch
        %228 = sbr.rel (%p226) target = $region56
      $region55: #{tpu_custom_call.1} parent=5 // pred_region
        %s229 = ssub.s32 %s12, 2
      $region56: #{tpu_custom_call.1} parent=5 // pred_fallthru
        _
    $region6: #{tpu_custom_call.1} parent=1 // loop_footer
      %s16 = sadd.s32 1, %s12
    $region7: #{tpu_custom_call.1} parent=1 // loop_footer_branch
      %11 = sbr.rel target = $region3
    $region8: #{tpu_custom_call.1} parent=1 // loop_exit
      _
    %230 = vsyncpa [#allocation5], 1
    %s231 = scalar_lea.sflag [#allocation5], 1
    %232 = vsyncpa %s231, 1

</llo_original>
